<compile_context>
chip_gen: v5e
topology: v5e:2x2
jax: 0.10.0
libtpu: 0.0.40
codegen_flags: <defaults>
</compile_context>

<pallas_src>
import functools

import jax
import jax.numpy as jnp
from jax.experimental import pallas as pl
from jax.experimental.pallas import tpu as pltpu


def _conv_kernel(xs_ref, w_ref, o_ref, *, C, OH, OW, KH, KW):
    """One image per grid step.

    xs_ref: (1, 2*KW*C, (OH+1)*OW)  tap-phase planes, spatially flattened
    w_ref:  (OC, KH*KW*C + 1)       weights with bias folded in (ones-row)
    o_ref:  (1, OC, OH*OW)
    """
    M = OH * OW
    pieces = []
    for i in range(KH):                       # kernel row tap
        for j in range(KW):                   # kernel column tap
            t = j * 2 + (i % 2)               # plane index: (col tap, row parity)
            start = (i // 2) * OW              # row shift inside the flattened plane
            # Contiguous static slice -> (C, M); K ordering is (i, j, c).
            pieces.append(xs_ref[0, t * C:(t + 1) * C, start:start + M])
    pieces.append(jnp.ones((1, M), jnp.float32))          # bias row
    patch = jnp.concatenate(pieces, axis=0)               # (KH*KW*C + 1, M)
    o_ref[0] = jnp.dot(w_ref[...], patch, preferred_element_type=jnp.float32)


def cnn_forward(x, weight, bias, *, stride=2, padding=1):
    """Forward pass matching torch.nn.Conv2d(3, 5, 3, stride=2, padding=1).

    x:      (N, 3, H, W)  float32, NCHW
    weight: (5, 3, 3, 3)  float32  (OC, IC, KH, KW)  -- PyTorch layout
    bias:   (5,)          float32
    returns (N, 5, OH, OW) float32, NCHW
    """
    N, C, H, W = x.shape
    OC, IC, KH, KW = weight.shape
    assert C == IC
    assert (KH, KW, stride, padding) == (3, 3, 2, 1), "specialized to 3x3 / s2 / p1"

    OH = (H + 2 * padding - KH) // stride + 1
    OW = (W + 2 * padding - KW) // stride + 1
    M = OH * OW
    Kb = C * KH * KW + 1                      # + folded bias row

    # ---- host-side tap-phase rearrangement (replaces HBM im2col) ----------
    # Pad so every 3x3/stride-2 window is in-bounds, then extract, for each
    # kernel column tap j and row parity p, the plane
    #   plane[j, p][n, c, r, s] = xpad[n, c, 2*r + p, 2*s + j]
    # Flattened over (r, s), each tap window becomes a *contiguous* slice, so
    # the kernel needs no strided access and no reshapes.
    Hp, Wp = 2 * OH + 2, 2 * OW + 2
    xp = jnp.pad(x, ((0, 0), (0, 0),
                     (padding, Hp - H - padding),
                     (padding, Wp - W - padding)))
    planes = [xp[:, :, p:p + 2 * (OH + 1):2, j:j + 2 * OW:2]       # (N, C, OH+1, OW)
              for j in range(KW) for p in range(2)]
    xs = jnp.stack(planes, axis=1)                                  # (N, 6, C, OH+1, OW)
    xs = xs.reshape(N, 2 * KW * C, (OH + 1) * OW)

    # ---- weights: (OC, KH, KW, C) flattening + bias folded as a column -----
    w_mat = weight.transpose(0, 2, 3, 1).reshape(OC, C * KH * KW)
    w_mat = jnp.concatenate([w_mat, bias.reshape(OC, 1)], axis=1)   # (OC, Kb)

    kernel = functools.partial(_conv_kernel, C=C, OH=OH, OW=OW, KH=KH, KW=KW)

    out = pl.pallas_call(
        kernel,
        out_shape=jax.ShapeDtypeStruct((N, OC, M), jnp.float32),
        grid_spec=pltpu.PrefetchScalarGridSpec(
            num_scalar_prefetch=0,
            grid=(N,),
            in_specs=[
                # Full tap-phase block for image n (last two dims = full dims).
                pl.BlockSpec((1, 2 * KW * C, (OH + 1) * OW), lambda n: (n, 0, 0)),
                # Tiny weight matrix, resident across the whole grid.
                pl.BlockSpec((OC, Kb), lambda n: (0, 0)),
            ],
            out_specs=pl.BlockSpec((1, OC, M), lambda n: (n, 0, 0)),
        ),
        compiler_params=pltpu.CompilerParams(
            dimension_semantics=("parallel",),      # batch axis -> both TCs on v7x
            vmem_limit_bytes=32 * 1024 * 1024,      # explicit; fits v7x 64 MiB phys
        ),
        cost_estimate=pl.CostEstimate(
            flops=2 * N * OC * Kb * M,
            transcendentals=0,
            bytes_accessed=4 * (xs.size + w_mat.size + N * OC * M),
        ),
    )(xs, w_mat)

    # Row-major reshape to NCHW is free (no transpose / extra HBM pass).
    return out.reshape(N, OC, OH, OW)


if __name__ == "__main__":
    key = jax.random.PRNGKey(0)
    kx, kw_, kb = jax.random.split(key, 3)

    # Small shapes consistent with the module: batch=2, in_channels=3, 16x16.
    x = jax.random.normal(kx, (2, 3, 16, 16), dtype=jnp.float32)
    fan_in = 3 * 3 * 3
    bound = 1.0 / (fan_in ** 0.5)
    weight = jax.random.uniform(kw_, (5, 3, 3, 3), minval=-bound, maxval=bound,
                                dtype=jnp.float32)
    bias = jax.random.uniform(kb, (5,), minval=-bound, maxval=bound,
                              dtype=jnp.float32)

    y = jax.jit(cnn_forward)(x, weight, bias)
    jax.block_until_ready(y)

    # Cross-check against XLA's convolution (same semantics as torch Conv2d).
    y_ref = jax.lax.conv_general_dilated(
        x, weight, window_strides=(2, 2), padding=((1, 1), (1, 1)),
        dimension_numbers=("NCHW", "OIHW", "NCHW"),
    ) + bias.reshape(1, -1, 1, 1)
    assert y.shape == (2, 5, 8, 8), y.shape
    assert jnp.allclose(y, y_ref, atol=1e-5, rtol=1e-5), "mismatch vs reference conv"

    print("KERNEL_OK")
</pallas_src>

<mosaic_0001>
module attributes {stable_mosaic.version = 11 : i64} {
  func.func @_conv_kernel(%arg0: i32, %arg1: memref<1x18x72xf32, #tpu.memory_space<vmem>>, %arg2: memref<5x28xf32, #tpu.memory_space<vmem>>, %arg3: memref<1x5x64xf32, #tpu.memory_space<vmem>>) attributes {dimension_semantics = [#tpu.dimension_semantics<parallel>], iteration_bounds = array<i64: 2>, scalar_prefetch = 0 : i64, scratch_operands = 0 : i64, tpu.core_type = #tpu.core_type<tc>, window_params = [{transform_indices = @transform_0, window_bounds = array<i64: 1, 18, 72>}, {pipeline_mode = #tpu.pipeline_mode<synchronous>, transform_indices = @transform_1, window_bounds = array<i64: 5, 28>}, {transform_indices = @transform_2, window_bounds = array<i64: 1, 5, 64>}]} {
    %c0 = arith.constant 0 : index
    %c0_0 = arith.constant 0 : index
    %c0_1 = arith.constant 0 : index
    %0 = vector.load %arg1[%c0, %c0_0, %c0_1] : memref<1x18x72xf32, #tpu.memory_space<vmem>>, vector<1x3x64xf32>
    %1 = vector.shape_cast %0 : vector<1x3x64xf32> to vector<3x64xf32>
    %c0_2 = arith.constant 0 : index
    %c6 = arith.constant 6 : index
    %c0_3 = arith.constant 0 : index
    %2 = vector.load %arg1[%c0_2, %c6, %c0_3] : memref<1x18x72xf32, #tpu.memory_space<vmem>>, vector<1x3x64xf32>
    %3 = vector.shape_cast %2 : vector<1x3x64xf32> to vector<3x64xf32>
    %c0_4 = arith.constant 0 : index
    %c12 = arith.constant 12 : index
    %c0_5 = arith.constant 0 : index
    %4 = vector.load %arg1[%c0_4, %c12, %c0_5] : memref<1x18x72xf32, #tpu.memory_space<vmem>>, vector<1x3x64xf32>
    %5 = vector.shape_cast %4 : vector<1x3x64xf32> to vector<3x64xf32>
    %c0_6 = arith.constant 0 : index
    %c3 = arith.constant 3 : index
    %c0_7 = arith.constant 0 : index
    %6 = vector.load %arg1[%c0_6, %c3, %c0_7] : memref<1x18x72xf32, #tpu.memory_space<vmem>>, vector<1x3x64xf32>
    %7 = vector.shape_cast %6 : vector<1x3x64xf32> to vector<3x64xf32>
    %c0_8 = arith.constant 0 : index
    %c9 = arith.constant 9 : index
    %c0_9 = arith.constant 0 : index
    %8 = vector.load %arg1[%c0_8, %c9, %c0_9] : memref<1x18x72xf32, #tpu.memory_space<vmem>>, vector<1x3x64xf32>
    %9 = vector.shape_cast %8 : vector<1x3x64xf32> to vector<3x64xf32>
    %c0_10 = arith.constant 0 : index
    %c15 = arith.constant 15 : index
    %c0_11 = arith.constant 0 : index
    %10 = vector.load %arg1[%c0_10, %c15, %c0_11] : memref<1x18x72xf32, #tpu.memory_space<vmem>>, vector<1x3x64xf32>
    %11 = vector.shape_cast %10 : vector<1x3x64xf32> to vector<3x64xf32>
    %c0_12 = arith.constant 0 : index
    %c0_13 = arith.constant 0 : index
    %c8 = arith.constant 8 : index
    %12 = vector.load %arg1[%c0_12, %c0_13, %c8] : memref<1x18x72xf32, #tpu.memory_space<vmem>>, vector<1x3x64xf32>
    %13 = vector.shape_cast %12 : vector<1x3x64xf32> to vector<3x64xf32>
    %c0_14 = arith.constant 0 : index
    %c6_15 = arith.constant 6 : index
    %c8_16 = arith.constant 8 : index
    %14 = vector.load %arg1[%c0_14, %c6_15, %c8_16] : memref<1x18x72xf32, #tpu.memory_space<vmem>>, vector<1x3x64xf32>
    %15 = vector.shape_cast %14 : vector<1x3x64xf32> to vector<3x64xf32>
    %c0_17 = arith.constant 0 : index
    %c12_18 = arith.constant 12 : index
    %c8_19 = arith.constant 8 : index
    %16 = vector.load %arg1[%c0_17, %c12_18, %c8_19] : memref<1x18x72xf32, #tpu.memory_space<vmem>>, vector<1x3x64xf32>
    %17 = vector.shape_cast %16 : vector<1x3x64xf32> to vector<3x64xf32>
    %cst = arith.constant 1.000000e+00 : f32
    %18 = vector.broadcast %cst : f32 to vector<1x64xf32>
    %19 = tpu.concatenate %1, %3, %5, %7, %9, %11, %13, %15, %17, %18 in 0 : vector<3x64xf32>, vector<3x64xf32>, vector<3x64xf32>, vector<3x64xf32>, vector<3x64xf32>, vector<3x64xf32>, vector<3x64xf32>, vector<3x64xf32>, vector<3x64xf32>, vector<1x64xf32> -> vector<28x64xf32>
    %c0_20 = arith.constant 0 : index
    %c0_21 = arith.constant 0 : index
    %20 = vector.load %arg2[%c0_20, %c0_21] : memref<5x28xf32, #tpu.memory_space<vmem>>, vector<5x28xf32>
    %cst_22 = arith.constant dense<0.000000e+00> : vector<5x64xf32>
    %21 = tpu.matmul %20, %19, %cst_22 {dimension_numbers = #tpu.dot_dimension_numbers<[1], [0], [0], [1], [0, 0, 1, 1], [], []>} : vector<5x28xf32>, vector<28x64xf32>, vector<5x64xf32> -> vector<5x64xf32>
    %c0_23 = arith.constant 0 : index
    %c0_24 = arith.constant 0 : index
    %c0_25 = arith.constant 0 : index
    %22 = vector.load %arg3[%c0_23, %c0_24, %c0_25] : memref<1x5x64xf32, #tpu.memory_space<vmem>>, vector<1x5x64xf32>
    %23 = vector.shape_cast %22 : vector<1x5x64xf32> to vector<5x64xf32>
    %24 = vector.shape_cast %21 : vector<5x64xf32> to vector<1x5x64xf32>
    tpu.vector_store %arg3[%c0_23, %c0_24, %c0_25], %24 {strides = array<i32>} : memref<1x5x64xf32, #tpu.memory_space<vmem>>, vector<1x5x64xf32>,
    return
  }
  func.func @transform_0(%arg0: i32) -> (i32, i32, i32) {
    %c0_i32 = arith.constant 0 : i32
    %c0_i32_0 = arith.constant 0 : i32
    %c0_i32_1 = arith.constant 0 : i32
    return %arg0, %c0_i32, %c0_i32_0 : i32, i32, i32
  }
  func.func @transform_1(%arg0: i32) -> (i32, i32) {
    %c0_i32 = arith.constant 0 : i32
    %c0_i32_0 = arith.constant 0 : i32
    %c0_i32_1 = arith.constant 0 : i32
    return %c0_i32, %c0_i32_0 : i32, i32
  }
  func.func @transform_2(%arg0: i32) -> (i32, i32, i32) {
    %c0_i32 = arith.constant 0 : i32
    %c0_i32_0 = arith.constant 0 : i32
    %c0_i32_1 = arith.constant 0 : i32
    return %arg0, %c0_i32, %c0_i32_0 : i32, i32, i32
  }
}

</mosaic_0001>

<llo_original>
// kernel: cnn_forward.1
$region0: #{cnn_forward.1}
  #allocation0 [shape = 'u32[]', space=smem, size = 0x4, offset = 0x4, fixed_abs, tag = 'smem constant byte address 0x4 - core index']
  #allocation1 [shape = 'u32[72,128]{1,0:T(1,128)}', space=vmem, size = 0x9000, scoped, tag = 'internal scratch']
  %s0 = inlined_call_operand.vmem [shape: f32[2,18,72], index: 0, kind: input, shape index: {}]
  %s1 = inlined_call_operand.vmem [shape: f32[5,28], index: 1, kind: input, shape index: {}]
  %s2 = inlined_call_operand.vmem [shape: f32[2,5,64], index: 2, kind: output, shape index: {}]
  %s3 = sld [smem:[#allocation0]]
  $region41: #{cnn_forward.1} parent=0
    _
  %s5 = ssub.s32 1, %s3
  %s6 = scalar_select 0, %s5, %s3
  loop: start=0, step=1, limit=4
  $region2: #{cnn_forward.1} parent=0 // loop_pre_header
    _
  $region3: #{cnn_forward.1} parent=0 // loop_header
    %s8 = sphi 0, %s12
    %p9 = scmp.ge.s32.totalorder %s8, 4
    %s18 = sphi 0, %s20
    %s21 = sphi 0, %s18
    %s22 = sphi 0, %s21
    %s38 = sphi 0, %s22
    %s42 = sphi 0, %s42
    %s44 = sphi 0, %s42
    %s45 = sphi 0, %s44
    %s59 = sphi 0, %s45
    %s65 = sphi 0, %s67
    %s68 = sphi 0, %s65
    %s69 = sphi 0, %s68
    %s85 = sphi 0, %s69
  $region4: #{cnn_forward.1} parent=0 // loop_header_branch
    %11 = sbr.rel (%p9) target = $region8
  $region5: #{cnn_forward.1} parent=0 // loop_body
    %s13 = ssub.s32 %s8, 1
    %s14 = ssub.s32 %s8, 2
    %s15 = sadd.s32 %s8, 1
    %s16 = ssub.s32 %s8, %s15
    %p17 = scmp.eq.s32.totalorder %s16, 0
    %s19 = sadd.s32 %s18, 1
    %s20 = scalar_select %p17, %s18, %s19
    %p23 = pneg %p17
    %p24 = scmp.eq.s32.totalorder %s8, 1
    %p25 = por %p23, %p24
    %p26 = scmp.ne.s32.totalorder %s18, %s21
    %p27 = scmp.eq.s32.totalorder %s8, 0
    %p28 = por %p26, %p27
    %p29 = scmp.ne.s32.totalorder %s18, %s21
    %p30 = scmp.eq.s32.totalorder %s13, 1
    %p31 = por %p29, %p30
    %p32 = scmp.ne.s32.totalorder %s21, %s22
    %p33 = scmp.eq.s32.totalorder %s13, 0
    %p34 = por %p32, %p33
    %p35 = scmp.ne.s32.totalorder %s21, %s22
    %p36 = scmp.eq.s32.totalorder %s14, 1
    %p37 = por %p35, %p36
    %p39 = scmp.ne.s32.totalorder %s22, %s38
    %p40 = scmp.eq.s32.totalorder %s14, 0
    %p41 = por %p39, %p40
    %s43 = sadd.s32 %s42, 1
    %p46 = scmp.eq.s32.totalorder %s8, 1
    %p47 = scmp.ne.s32.totalorder %s42, %s44
    %p48 = scmp.eq.s32.totalorder %s8, 0
    %p49 = por %p47, %p48
    %p50 = scmp.ne.s32.totalorder %s42, %s44
    %p51 = scmp.eq.s32.totalorder %s13, 1
    %p52 = por %p50, %p51
    %p53 = scmp.ne.s32.totalorder %s44, %s45
    %p54 = scmp.eq.s32.totalorder %s13, 0
    %p55 = por %p53, %p54
    %p56 = scmp.ne.s32.totalorder %s44, %s45
    %p57 = scmp.eq.s32.totalorder %s14, 1
    %p58 = por %p56, %p57
    %p60 = scmp.ne.s32.totalorder %s45, %s59
    %p61 = scmp.eq.s32.totalorder %s14, 0
    %p62 = por %p60, %p61
    %s63 = ssub.s32 %s8, %s15
    %p64 = scmp.eq.s32.totalorder %s63, 0
    %s66 = sadd.s32 %s65, 1
    %s67 = scalar_select %p64, %s65, %s66
    %p70 = pneg %p64
    %p71 = scmp.eq.s32.totalorder %s8, 1
    %p72 = por %p70, %p71
    %p73 = scmp.ne.s32.totalorder %s65, %s68
    %p74 = scmp.eq.s32.totalorder %s8, 0
    %p75 = por %p73, %p74
    %p76 = scmp.ne.s32.totalorder %s65, %s68
    %p77 = scmp.eq.s32.totalorder %s13, 1
    %p78 = por %p76, %p77
    %p79 = scmp.ne.s32.totalorder %s68, %s69
    %p80 = scmp.eq.s32.totalorder %s13, 0
    %p81 = por %p79, %p80
    %p82 = scmp.ne.s32.totalorder %s68, %s69
    %p83 = scmp.eq.s32.totalorder %s14, 1
    %p84 = por %p82, %p83
    %p86 = scmp.ne.s32.totalorder %s69, %s85
    %p87 = scmp.eq.s32.totalorder %s14, 0
    %p88 = por %p86, %p87
    %p89 = scmp.le.s32.totalorder 1, %s8
    %p90 = scmp.lt.s32.totalorder %s8, 3
    %p91 = pnand %p89, %p90
    %p92 = pneg %p91
    // Predicated region
    $region9: #{cnn_forward.1} parent=5 // pred_check
      _
    $region10: #{cnn_forward.1} parent=5 // pred_check_branch
      %94 = sbr.rel (%p91) target = $region12
    $region11: #{cnn_forward.1} parent=5 // pred_region
      %s95 = ssub.s32 %s8, 1
      // Predicated region
      $region13: #{cnn_forward.1} parent=11 // pred_check
        %p96 = pneg %p55
      $region14: #{cnn_forward.1} parent=11 // pred_check_branch
        %98 = sbr.rel (%p96) target = $region16
      $region15: #{cnn_forward.1} parent=11 // pred_region
        _
      $region16: #{cnn_forward.1} parent=11 // pred_fallthru
        _
    $region12: #{cnn_forward.1} parent=5 // pred_fallthru
      _
    %p99 = scmp.lt.s32.totalorder %s8, 2
    // Predicated region
    $region17: #{cnn_forward.1} parent=5 // pred_check
      %p100 = pneg %p99
    $region18: #{cnn_forward.1} parent=5 // pred_check_branch
      %102 = sbr.rel (%p100) target = $region20
    $region19: #{cnn_forward.1} parent=5 // pred_region
      // Predicated region
      $region21: #{cnn_forward.1} parent=19 // pred_check
        %p103 = pneg %p28
      $region22: #{cnn_forward.1} parent=19 // pred_check_branch
        %105 = sbr.rel (%p103) target = $region24
      $region23: #{cnn_forward.1} parent=19 // pred_region
        %p106 = scmp.lt.s32.totalorder %s8, 1
        %s107 = scalar_select %p106, %s8, 1
        %s108 = smul.addr %s107, 3
        %s109 = smul.addr %s108, 8
        %s110 = scalar_lea.vmem %s0, %s109
      $region24: #{cnn_forward.1} parent=19 // pred_fallthru
        _
    $region20: #{cnn_forward.1} parent=5 // pred_fallthru
      _
    %p111 = scmp.le.s32.totalorder 1, %s8
    %p112 = scmp.lt.s32.totalorder %s8, 3
    %p113 = pnand %p111, %p112
    %p114 = pneg %p113
    // Predicated region
    $region25: #{cnn_forward.1} parent=5 // pred_check
      _
    $region26: #{cnn_forward.1} parent=5 // pred_check_branch
      %116 = sbr.rel (%p113) target = $region28
    $region27: #{cnn_forward.1} parent=5 // pred_region
      %s117 = ssub.s32 %s8, 1
      %p118 = scmp.lt.s32.totalorder %s13, 1
      %s119 = scalar_select %p118, %s13, 1
      %s120 = smul.addr %s119, 3
      %s121 = smul.addr %s120, 8
      %s122 = scalar_lea.vmem %s0, %s121
      %p123 = pneg %p34
      %p124 = pneg %p31
      %p125 = pneg %p55
      %p126 = pneg %p52
      %p127 = pneg %p81
      %p128 = pneg %p78
      %p129 = scmp.lt.s32.totalorder %s13, 1
      %s130 = scalar_select %p129, %s13, 1
      %s131 = smul.addr %s130, 8
      %s132 = scalar_lea.vmem %s2, %s131
      %p133 = scmp.lt.s32.totalorder %s13, 1
      %s134 = scalar_select %p133, %s13, 1
      %s135 = smul.addr %s134, 3
      %s136 = smul.addr %s135, 8
      %s137 = scalar_lea.vmem %s0, %s136
      %p138 = scmp.lt.s32.totalorder %s13, 1
      %s139 = scalar_select %p138, %s13, 1
      %s140 = smul.addr %s139, 8
      %s141 = scalar_lea.vmem %s2, %s140
      %v142 = vld [vmem:[%s137] sm:$0x7]
      %v143 = vld [vmem:[%s137 + $0x6] sm:$0x7]
      %v144 = vld [vmem:[%s137 + $0xc] sm:$0x7]
      %v145 = vld [vmem:[%s137 + $0x3] sm:$0x7]
      %v146 = vld [vmem:[%s137 + $0x9] sm:$0x7]
      %v147 = vld [vmem:[%s137 + $0xf] sm:$0x7]
      %v149 = vrot.slane %v143, 5
      %v152 = vrot.slane %v144, 2
      %v155 = vrot.slane %v145, 7
      %v158 = vrot.slane %v146, 4
      %v161 = vrot.slane %v147, 1
      %v164 = vrot.slane %v142, 6
      %165 = vrot.lane.b32.xlu0 %v164, 120
      %v166 = vpop.permute.xlu0 %165
      %v168 = vrot.slane %v143, 3
      %169 = vrot.lane.b32.xlu0 %v168, 120
      %v170 = vpop.permute.xlu0 %169
      %172 = vrot.lane.b32.xlu0 %v144, 120
      %v173 = vpop.permute.xlu0 %172
      %vm175 = vcmask 1042432
      %v176 = vsel %vm175, %v142, %v149
      %vm177 = vcmask 1045504
      %v178 = vsel %vm177, %v176, %v152
      %vm179 = vcmask 1040384
      %v180 = vsel %vm179, %v152, %v155
      %vm181 = vcmask 1043456
      %v182 = vsel %vm181, %v180, %v158
      %vm183 = vcmask 1046528
      %v184 = vsel %vm183, %v182, %v161
      %vm185 = vcmask 1041408
      %v186 = vsel %vm185, %v161, %v166
      %vm187 = vcmask 1044480
      %v188 = vsel %vm187, %v186, %v170
      %v189 = vsel %vm175, %v173, 1.0
      %v190 = vld [vmem:[%s1] sm:$0x1f]
      %vm191 = vcmask 228352
      %v193 = vsel %vm191, %v190, 0
      %v196 = vsel %vm181, %v189, 0
      %198 = vmatpush.msra.mxu0 0.0
      %199 = vmatpush.msra.mxu0 0.0
      %200 = vmatpush.msra.mxu0 0.0
      %201 = vmatpush.msra.mxu0 0.0
      %202 = vmatpush.msra.mxu0 0.0
      %203 = vmatpush.msra.mxu0 0.0
      %204 = vmatpush.msra.mxu0 0.0
      %205 = vmatpush.msra.mxu0 0.0
      %206 = vmatpush.msra.mxu0 0.0
      %207 = vmatpush.msra.mxu0 0.0
      %208 = vmatpush.msra.mxu0 0.0
      %209 = vmatpush.msra.mxu0 0.0
      %210 = vmatpush.msra.mxu0 %v196
      %211 = vmatpush.msra.mxu0 %v188
      %212 = vmatpush.msra.mxu0 %v184
      %213 = vmatpush.msra.mxu0 %v178
      %214 = vmatmul.f32.gmra.mxu0 %v193
      %v215 = vpop.f32.mrf.mxu0
      %v216 = vadd.f32 0.0, %v215
      %217 = vdwg.mxu0
      %vm218 = vcmask 520192
      %219 = vst.msk [vmem:[%s141] sm:$0x1f] %vm218, %v216
      %p220 = scmp.lt.s32.totalorder %s13, 1
      %s221 = scalar_select %p220, %s13, 1
      %s222 = smul.addr %s221, 8
      %s223 = scalar_lea.vmem %s2, %s222
      // Predicated region
      $region29: #{cnn_forward.1} parent=27 // pred_check
        %p224 = pneg %p78
      $region30: #{cnn_forward.1} parent=27 // pred_check_branch
        %226 = sbr.rel (%p224) target = $region32
      $region31: #{cnn_forward.1} parent=27 // pred_region
        _
      $region32: #{cnn_forward.1} parent=27 // pred_fallthru
        _
    $region28: #{cnn_forward.1} parent=5 // pred_fallthru
      _
    %p227 = scmp.le.s32.totalorder 2, %s8
    // Predicated region
    $region33: #{cnn_forward.1} parent=5 // pred_check
      %p228 = pneg %p227
    $region34: #{cnn_forward.1} parent=5 // pred_check_branch
      %230 = sbr.rel (%p228) target = $region36
    $region35: #{cnn_forward.1} parent=5 // pred_region
      %s231 = ssub.s32 %s8, 2
      // Predicated region
      $region37: #{cnn_forward.1} parent=35 // pred_check
        %p232 = pneg %p84
      $region38: #{cnn_forward.1} parent=35 // pred_check_branch
        %234 = sbr.rel (%p232) target = $region40
      $region39: #{cnn_forward.1} parent=35 // pred_region
        %p235 = scmp.lt.s32.totalorder %s14, 1
        %s236 = scalar_select %p235, %s14, 1
        %s237 = smul.addr %s236, 8
        %s238 = scalar_lea.vmem %s2, %s237
      $region40: #{cnn_forward.1} parent=35 // pred_fallthru
        _
    $region36: #{cnn_forward.1} parent=5 // pred_fallthru
      _
  $region6: #{cnn_forward.1} parent=0 // loop_footer
    %s12 = sadd.s32 1, %s8
  $region7: #{cnn_forward.1} parent=0 // loop_footer_branch
    %7 = sbr.rel target = $region3
  $region8: #{cnn_forward.1} parent=0 // loop_exit
    _

</llo_original>
